<compile_context>
chip_gen: v7x
topology: tpu7x:2x2x1
jax: 0.10.0
libtpu: 0.0.40
codegen_flags: <defaults>
</compile_context>

<pallas_src>
import functools

import jax
import jax.numpy as jnp
from jax import lax
from jax.experimental import pallas as pl
from jax.experimental.pallas import tpu as pltpu


# ----------------------------------------------------------------------------
# Config
# ----------------------------------------------------------------------------
class Config:
    unet_dim = 16
    unet_outdim = 3
    dim_mults = (1, 2)
    use_attn = False          # mid_attn == nn.Identity
    cond_use_wn = False
    use_instance_norm = False
    weight_init = False
    cond_on_res = False       # -> sigmoid output head


# ----------------------------------------------------------------------------
# Parameter construction (deterministic, synthetic, PyTorch layouts)
# ----------------------------------------------------------------------------
def _conv_params(key, cout, cin, kh, kw, scale=0.1):
    k1, k2 = jax.random.split(key)
    return {
        "w": jax.random.normal(k1, (cout, cin, kh, kw), jnp.float32) * scale,
        "b": jax.random.normal(k2, (cout,), jnp.float32) * scale,
    }


def _resnet_params(key, din, dout):
    ks = jax.random.split(key, 3)
    p = {
        "block1": _conv_params(ks[0], dout, din, 3, 3),
        "block2": _conv_params(ks[1], dout, dout, 3, 3),
    }
    if din != dout:
        p["res"] = _conv_params(ks[2], dout, din, 1, 1)
    return p


def build_unet_params(key, config, in_dim=3):
    dim = config.unet_dim
    dims = [in_dim] + [dim * m for m in config.dim_mults]
    in_out = list(zip(dims[:-1], dims[1:]))
    num_res = len(in_out)
    keys = iter(jax.random.split(key, 64))
    params = {"downs": [], "ups": []}

    for ind, (di, do) in enumerate(in_out):
        is_last = ind >= num_res - 1
        blk = {
            "resnet1": _resnet_params(next(keys), di, do),   # use_cond=False -> di * 1
            "resnet2": _resnet_params(next(keys), do, do),
        }
        if not is_last:
            blk["down"] = _conv_params(next(keys), do, do, 3, 3)   # Downsample: conv3x3 s2 p1
        params["downs"].append(blk)

    mid_dim = dims[-1]
    params["mid1"] = _resnet_params(next(keys), mid_dim, mid_dim)
    # TODO(synk): mid_attn = Residual(Rezero(LinearAttention)) only when use_attn=True;
    # with use_attn=False it is nn.Identity and is therefore omitted here.
    params["mid2"] = _resnet_params(next(keys), mid_dim, mid_dim)

    for ind, (di, do) in enumerate(reversed(in_out[1:])):
        is_last = ind >= num_res - 1
        blk = {
            "resnet1": _resnet_params(next(keys), do * 2, di),
            "resnet2": _resnet_params(next(keys), di, di),
        }
        if not is_last:
            k1, k2 = jax.random.split(next(keys))
            blk["up"] = {  # Upsample: ConvTranspose2d(di, di, 4, 2, 1); PyTorch layout (Cin, Cout, 4, 4)
                "w": jax.random.normal(k1, (di, di, 4, 4), jnp.float32) * 0.1,
                "b": jax.random.normal(k2, (di,), jnp.float32) * 0.1,
            }
        params["ups"].append(blk)

    # final_conv = Sequential(Block(dim, dim), Conv2d(dim, out_dim, 1))
    params["final_block"] = _conv_params(next(keys), dim, dim, 3, 3)
    params["final_conv"] = _conv_params(next(keys), config.unet_outdim, dim, 1, 1)
    # NOTE: time_pos_emb / self.mlp exist in __init__ but forward(x) never uses them.
    return params


# ----------------------------------------------------------------------------
# Plain-JAX (XLA conv) reference — mirrors the PyTorch forward line by line.
# Used only as a runtime correctness check for the Pallas kernel.
# ----------------------------------------------------------------------------
def _gold_conv(x, w, b, stride, pad):
    y = lax.conv_general_dilated(
        x, w, (stride, stride), ((pad, pad), (pad, pad)),
        dimension_numbers=("NCHW", "OIHW", "NCHW"),
        precision=lax.Precision.HIGHEST)
    return y + b.reshape(1, -1, 1, 1)


def _gold_convT(x, w, b):
    # ConvTranspose2d(k=4, s=2, p=1) == conv on the 2x-dilated input with the
    # spatially-flipped / in-out-swapped kernel and padding k-1-p = 2.
    w_eq = jnp.flip(w, (2, 3)).transpose(1, 0, 2, 3)
    y = lax.conv_general_dilated(
        x, w_eq, (1, 1), ((2, 2), (2, 2)), lhs_dilation=(2, 2),
        dimension_numbers=("NCHW", "OIHW", "NCHW"),
        precision=lax.Precision.HIGHEST)
    return y + b.reshape(1, -1, 1, 1)


def _gold_mish(x):  # PyTorch Mish: x * tanh(softplus(x)), softplus threshold 20
    sp = jnp.where(x > 20.0, x, jnp.log1p(jnp.exp(jnp.minimum(x, 20.0))))
    return x * jnp.tanh(sp)


def _gold_resnet(x, p):
    h = _gold_mish(_gold_conv(x, p["block1"]["w"], p["block1"]["b"], 1, 1))
    h = _gold_mish(_gold_conv(h, p["block2"]["w"], p["block2"]["b"], 1, 1))
    r = _gold_conv(x, p["res"]["w"], p["res"]["b"], 1, 0) if "res" in p else x
    return h + r


def unet_cond_reference(params, x):
    h = []
    for blk in params["downs"]:
        x = _gold_resnet(x, blk["resnet1"])
        x = _gold_resnet(x, blk["resnet2"])
        h.append(x)
        if "down" in blk:
            x = _gold_conv(x, blk["down"]["w"], blk["down"]["b"], 2, 1)
    x = _gold_resnet(x, params["mid1"])
    x = _gold_resnet(x, params["mid2"])
    for blk in params["ups"]:
        x = jnp.concatenate([x, h.pop()], axis=1)
        x = _gold_resnet(x, blk["resnet1"])
        x = _gold_resnet(x, blk["resnet2"])
        if "up" in blk:
            x = _gold_convT(x, blk["up"]["w"], blk["up"]["b"])
    x = _gold_mish(_gold_conv(x, params["final_block"]["w"], params["final_block"]["b"], 1, 1))
    x = _gold_conv(x, params["final_conv"]["w"], params["final_conv"]["b"], 1, 0)
    return jax.nn.sigmoid(x)   # cond_on_res=False


# ----------------------------------------------------------------------------
# Kernel-side layouts: pack x + all parameters into lane/MXU-friendly arrays.
# ----------------------------------------------------------------------------
_TAPS3 = [(dy, dx) for dy in (-1, 0, 1) for dx in (-1, 0, 1)]   # t = (dy+1)*3 + (dx+1)
_PHASES = [(0, 0), (0, 1), (1, 0), (1, 1)]


def _pad_axis_to(a, axis, mult):
    r = (-a.shape[axis]) % mult
    if r == 0:
        return a
    pads = [(0, 0)] * a.ndim
    pads[axis] = (0, r)
    return jnp.pad(a, pads)


def pack_inputs(params, x):
    """3x3 conv weights -> bf16 [9, Cout, Cin] (tap-major, Cin padded to 8k),
    1x1 weights -> bf16 [Cout, Cin], biases -> f32 [Cout, 1], plus one-hot
    stride-2 selection / ConvTranspose phase-scatter matrices.  Returns
    (flat list of arrays, name -> position dict, static metadata)."""
    B, C, H0, W0 = x.shape
    H1, W1 = H0 // 2, W0 // 2
    M0, M1 = B * H0 * W0, B * H1 * W1

    flat, pos = [], {}

    def put(name, arr):
        pos[name] = len(flat)
        flat.append(arr)

    # activation: lane-dense [C, B*H*W] matrix (column m = b*H*W + y*W + x)
    put("x", _pad_axis_to(x.transpose(1, 0, 2, 3).reshape(C, M0), 0, 8).astype(jnp.float32))

    def put_c3(name, p, splits=None):
        w = p["w"]
        cout, cin = w.shape[0], w.shape[1]
        wt = jnp.transpose(w, (2, 3, 0, 1)).reshape(9, cout, cin)   # [t, co, ci], t = kh*3+kw
        if splits is None:
            put(name + "_w", _pad_axis_to(wt, 2, 8).astype(jnp.bfloat16))
        else:
            off = 0
            for i, c in enumerate(splits):
                put(f"{name}_w{i}",
                    _pad_axis_to(wt[:, :, off:off + c], 2, 8).astype(jnp.bfloat16))
                off += c
        put(name + "_b", p["b"].reshape(cout, 1).astype(jnp.float32))

    def put_c1(name, p, splits=None):
        w = p["w"][:, :, 0, 0]                                      # [Cout, Cin]
        cout = w.shape[0]
        if splits is None:
            put(name + "_w", _pad_axis_to(w, 1, 8).astype(jnp.bfloat16))
        else:
            off = 0
            for i, c in enumerate(splits):
                put(f"{name}_w{i}",
                    _pad_axis_to(w[:, off:off + c], 1, 8).astype(jnp.bfloat16))
                off += c
        put(name + "_b", p["b"].reshape(cout, 1).astype(jnp.float32))

    def put_resnet(name, p, splits=None):
        put_c3(name + "_b1", p["block1"], splits)
        put_c3(name + "_b2", p["block2"])
        if "res" in p:
            put_c1(name + "_res", p["res"], splits)

    put_resnet("d0_r1", params["downs"][0]["resnet1"])
    put_resnet("d0_r2", params["downs"][0]["resnet2"])
    put_c3("d0_down", params["downs"][0]["down"])
    put_resnet("d1_r1", params["downs"][1]["resnet1"])
    put_resnet("d1_r2", params["downs"][1]["resnet2"])
    put_resnet("mid1", params["mid1"])
    put_resnet("mid2", params["mid2"])
    dmid = params["mid1"]["block1"]["w"].shape[0]            # 32: channel split of torch.cat
    put_resnet("u0_r1", params["ups"][0]["resnet1"], splits=(dmid, dmid))
    put_resnet("u0_r2", params["ups"][0]["resnet2"])
    wu = params["ups"][0]["up"]["w"]                          # (Cin, Cout, 4, 4)
    cu = wu.shape[1]
    put("u0_up_w",
        jnp.transpose(wu, (2, 3, 1, 0)).reshape(16, cu, wu.shape[0]).astype(jnp.bfloat16))
    put("u0_up_b", params["ups"][0]["up"]["b"].reshape(cu, 1).astype(jnp.float32))
    put_c3("final_block", params["final_block"])
    put_c1("final_conv", params["final_conv"])

    # one-hot matrices: stride-2 output selection and ConvTranspose phase scatter
    idx1 = jnp.arange(M1)
    b1 = idx1 // (H1 * W1)
    y1 = (idx1 // W1) % H1
    x1 = idx1 % W1
    src = b1 * (H0 * W0) + (2 * y1) * W0 + (2 * x1)
    put("sel_down", (jnp.arange(M0)[:, None] == src[None, :]).astype(jnp.bfloat16))
    for pi, (py, px) in enumerate(_PHASES):
        dst = b1 * (H0 * W0) + (2 * y1 + py) * W0 + (2 * x1 + px)
        put(f"scatter_{pi}", (dst[:, None] == jnp.arange(M0)[None, :]).astype(jnp.bfloat16))

    meta = dict(B=B, H0=H0, W0=W0, H1=H1, W1=W1, M0=M0, M1=M1,
                out_dim=params["final_conv"]["w"].shape[0])
    return flat, pos, meta


# ----------------------------------------------------------------------------
# The fused Pallas kernel
# ----------------------------------------------------------------------------
def make_unet_kernel(pos, n_inputs, meta, roll_like_jnp):
    B = meta["B"]
    H0, W0, H1, W1 = meta["H0"], meta["W0"], meta["H1"], meta["W1"]
    f32, bf16 = jnp.float32, jnp.bfloat16

    def kernel(*args):
        refs, out_ref = args[:n_inputs], args[n_inputs]

        def R(name):
            return refs[pos[name]]

        # ---- cached per-resolution tap validity masks -----------------------
        mask_cache = {}

        def tap_mask(H, W, dy, dx):
            key = (H, W, dy, dx)
            if key not in mask_cache:
                M = B * H * W
                lane = lax.broadcasted_iota(jnp.int32, (1, M), 1)
                xc = lane % W
                yc = (lane // W) % H
                ok = ((xc + dx >= 0) & (xc + dx < W) &
                      (yc + dy >= 0) & (yc + dy < H))
                mask_cache[key] = ok.astype(f32)
            return mask_cache[key]

        def shifted(a, dy, dx, H, W):
            """Returns bf16 s with s[:, m] = a[:, m + dy*W + dx] (0 if out of image)."""
            M = B * H * W
            s = dy * W + dx
            if s % M != 0:
                # pltpu.roll sign convention resolved at runtime by a probe kernel.
                amt = (-s) % M if roll_like_jnp else s % M
                a = pltpu.roll(a, amt, 1)
            if (dy, dx) != (0, 0):
                a = a * tap_mask(H, W, dy, dx)
            return a.astype(bf16)

        # ---- fused conv building blocks on [C, B*H*W] activations -----------
        def conv3x3(parts, name, H, W):
            """3x3 / stride 1 / pad 1: 9 shifted-tap matmuls, f32 accumulate."""
            if len(parts) == 1:
                wrefs = [R(name + "_w")]
            else:  # torch.cat input handled by splitting the weight along Cin
                wrefs = [R(f"{name}_w{i}") for i in range(len(parts))]
            acc = None
            for t, (dy, dx) in enumerate(_TAPS3):
                for wref, part in zip(wrefs, parts):
                    c = jnp.dot(wref[t], shifted(part, dy, dx, H, W),
                                preferred_element_type=f32)
                    acc = c if acc is None else acc + c
            return acc + R(name + "_b")[...]

        def conv1x1(parts, name):
            if len(parts) == 1:
                wrefs = [R(name + "_w")]
            else:
                wrefs = [R(f"{name}_w{i}") for i in range(len(parts))]
            acc = None
            for wref, part in zip(wrefs, parts):
                c = jnp.dot(wref[...], part.astype(bf16), preferred_element_type=f32)
                acc = c if acc is None else acc + c
            return acc + R(name + "_b")[...]

        def mish(v):   # x * tanh(softplus(x)), softplus threshold 20 (PyTorch)
            sp = jnp.where(v > 20.0, v, jnp.log(1.0 + jnp.exp(jnp.minimum(v, 20.0))))
            return v * jnp.tanh(sp)

        def block(parts, name, H, W):        # Block with groups=0 / use_in=False
            return mish(conv3x3(parts, name, H, W))

        def resnet(parts, name, H, W, has_res):
            h = block(parts, name + "_b1", H, W)
            h = block([h], name + "_b2", H, W)
            r = conv1x1(parts, name + "_res") if has_res else parts[0]
            return h + r

        # ------------------------------ forward -------------------------------
        # time_pos_emb / mlp unused by forward(x); mid_attn is Identity.
        x = R("x")[...]                                    # [8, M0]: 3 real + 5 zero-pad channels
        x = resnet([x], "d0_r1", H0, W0, True)             # 3  -> 16
        x = resnet([x], "d0_r2", H0, W0, False)            # 16 -> 16   (h[0] is never popped)
        # Downsample(16): stride-2 conv == full-res conv then one-hot select even (y, x)
        x = jnp.dot(conv3x3([x], "d0_down", H0, W0).astype(bf16),
                    R("sel_down")[...], preferred_element_type=f32)          # [16, M1]
        x = resnet([x], "d1_r1", H1, W1, True)             # 16 -> 32
        x = resnet([x], "d1_r2", H1, W1, False)            # 32 -> 32
        skip = x                                           # h[1], popped by the up path
        x = resnet([x], "mid1", H1, W1, False)
        x = resnet([x], "mid2", H1, W1, False)
        # torch.cat((x, h.pop()), dim=1): keep the two halves as separate parts.
        x = resnet([x, skip], "u0_r1", H1, W1, True)       # 64 -> 16
        x = resnet([x], "u0_r2", H1, W1, False)            # 16 -> 16
        # Upsample: ConvTranspose2d(16, 16, 4, 2, 1) via 2x2 phase decomposition.
        wu = R("u0_up_w")                                  # [16, Cout, Cin], t = kh*4 + kw
        up = None
        for pi, (py, px) in enumerate(_PHASES):
            phase = None
            for kh in ((1, 3) if py == 0 else (0, 2)):
                dy = (py - kh + 1) // 2
                for kw in ((1, 3) if px == 0 else (0, 2)):
                    dx = (px - kw + 1) // 2
                    c = jnp.dot(wu[kh * 4 + kw], shifted(x, dy, dx, H1, W1),
                                preferred_element_type=f32)
                    phase = c if phase is None else phase + c
            c = jnp.dot(phase.astype(bf16), R(f"scatter_{pi}")[...],
                        preferred_element_type=f32)
            up = c if up is None else up + c
        x = up + R("u0_up_b")[...]                          # [16, M0]
        # final_conv = Sequential(Block(dim, dim), Conv2d(dim, out_dim, 1)); then sigmoid
        x = block([x], "final_block", H0, W0)
        x = conv1x1([x], "final_conv")                      # [3, M0]
        x = pl.reciprocal(1.0 + jnp.exp(-x), approx=True)   # sigmoid via EUP reciprocal
        out_ref[...] = x

    return kernel


def unet_cond_forward_pallas(params, x, roll_like_jnp=True):
    flat, pos, meta = pack_inputs(params, x)
    n = len(flat)
    kernel = make_unet_kernel(pos, n, meta, roll_like_jnp)
    out_mat = pl.pallas_call(
        kernel,
        out_shape=jax.ShapeDtypeStruct((meta["out_dim"], meta["M0"]), jnp.float32),
        in_specs=[pl.BlockSpec(memory_space=pltpu.MemorySpace.VMEM)] * n,
        out_specs=pl.BlockSpec(memory_space=pltpu.MemorySpace.VMEM),
    )(*flat)
    B, _, H0, W0 = x.shape
    return out_mat.reshape(meta["out_dim"], B, H0, W0).transpose(1, 0, 2, 3)


# ----------------------------------------------------------------------------
# One-time probe: resolve pltpu.roll's sign convention on this backend.
# ----------------------------------------------------------------------------
def _detect_roll_convention():
    def k(x_ref, o_ref):
        o_ref[...] = pltpu.roll(x_ref[...], 1, 1)

    x = jnp.arange(8 * 128, dtype=jnp.float32).reshape(8, 128)
    y = pl.pallas_call(k, out_shape=jax.ShapeDtypeStruct((8, 128), jnp.float32))(x)
    if bool(jnp.array_equal(y, jnp.roll(x, 1, axis=1))):
        return True
    if bool(jnp.array_equal(y, jnp.roll(x, -1, axis=1))):
        return False
    raise AssertionError("pltpu.roll returned an unexpected permutation")


# ----------------------------------------------------------------------------
if __name__ == "__main__":
    config = Config()
    key = jax.random.PRNGKey(0)
    kp, kx = jax.random.split(key)

    params = build_unet_params(kp, config, in_dim=3)
    x = jax.random.normal(kx, (2, 3, 16, 16), jnp.float32)   # NCHW, like PyTorch

    roll_like_jnp = _detect_roll_convention()

    fwd = jax.jit(functools.partial(unet_cond_forward_pallas, roll_like_jnp=roll_like_jnp))
    out = jax.block_until_ready(fwd(params, x))

    # Independent plain-XLA conv reference (f32) for a runtime correctness check.
    ref = jax.block_until_ready(jax.jit(unet_cond_reference)(params, x))

    assert out.shape == (2, config.unet_outdim, 16, 16), out.shape
    assert bool(jnp.all(jnp.isfinite(out)))
    assert bool(jnp.all((out >= 0.0) & (out <= 1.0 + 1e-3)))   # sigmoid range (approx recip)
    max_err = float(jnp.max(jnp.abs(out - ref)))
    mean_err = float(jnp.mean(jnp.abs(out - ref)))
    assert mean_err < 1e-2 and max_err < 1e-1, (mean_err, max_err)  # bf16-matmul tolerance
    print("KERNEL_OK")
</pallas_src>

<mosaic_0001>
module attributes {stable_mosaic.version = 11 : i64} {
  func.func @k(%arg0: memref<8x128xf32, #tpu.memory_space<vmem>>, %arg1: memref<8x128xf32, #tpu.memory_space<vmem>>) attributes {dimension_semantics = [], scalar_prefetch = 0 : i64, scratch_operands = 0 : i64, tpu.core_type = #tpu.core_type<tc>} {
    %c0 = arith.constant 0 : index
    %c0_0 = arith.constant 0 : index
    %0 = vector.load %arg0[%c0, %c0_0] : memref<8x128xf32, #tpu.memory_space<vmem>>, vector<8x128xf32>
    %c1_i32 = arith.constant 1 : i32
    %1 = tpu.dynamic_rotate %0 by %c1_i32 dim 1 : vector<8x128xf32>, i32 -> vector<8x128xf32>
    %c0_1 = arith.constant 0 : index
    %c0_2 = arith.constant 0 : index
    %2 = vector.load %arg1[%c0_1, %c0_2] : memref<8x128xf32, #tpu.memory_space<vmem>>, vector<8x128xf32>
    tpu.vector_store %arg1[%c0_1, %c0_2], %1 {strides = array<i32>} : memref<8x128xf32, #tpu.memory_space<vmem>>, vector<8x128xf32>,
    return
  }
}

</mosaic_0001>

<llo_original>
// kernel: tpu_custom_call.1
$region0: #{tpu_custom_call.1}
  #allocation0 [shape = 'u32[]', space=smem, size = 0x4, offset = 0x4, fixed_abs, tag = 'smem constant byte address 0x4 - core index']
  #allocation1 [shape = 'u32[144,128]{1,0:T(1,128)}', space=vmem, size = 0x12000, scoped, tag = 'internal scratch']
  %s0 = inlined_call_operand.hbm [shape: f32[8,128], index: 0, kind: input, shape index: {}]
  %s1 = inlined_call_operand.hbm [shape: f32[8,128], index: 1, kind: output, shape index: {}]
  %s2 = sld [smem:[#allocation0]]
  $region18: #{tpu_custom_call.1} parent=0
    _
  %s4 = ssub.s32 1, %s2
  %s5 = scalar_select 0, %s4, %s2
  $region1: #{tpu_custom_call.1} parent=0
    #allocation2 [shape = 'u8[4096]{0}', space=vmem, size = 0x1000, scoped, tag = 'input window, operand 0, single buffered']
    #allocation3 [shape = 's32[1]{0}', space=sflag, size = 0x4, scoped, tag = 'scoped memory for tpu_custom_call.1']
    #allocation4 [shape = 's32[1]{0}', space=sflag, size = 0x4, scoped, tag = 'scoped memory for tpu_custom_call.1']
    #allocation5 [shape = 'u8[4096]{0}', space=vmem, size = 0x1000, scoped, tag = 'output window, operand 0, single buffered']
    %6 = vsyncpa [#allocation3], 0
    %7 = vsyncpa [#allocation4], 0
    // Predicated region
    $region2: #{tpu_custom_call.1} parent=1 // pred_check
      _
    $region3: #{tpu_custom_call.1} parent=1 // pred_check_branch
      %9 = sbr.rel (0) target = $region5
    $region4: #{tpu_custom_call.1} parent=1 // pred_region
      %s11 = ssub.s32 128, 128
      %12 = vsyncadd [#allocation3], %s11
      %s14 = sshll.u32 [#allocation2], 4
      %s15 = int_to_ptr.vmem [resolvable:$true] %s14
      %17 = dma.hbm_to_vmem [thread:$0]  %s0, 128, %s15, [#allocation3]
    $region5: #{tpu_custom_call.1} parent=1 // pred_fallthru
      _
    // Predicated region
    $region6: #{tpu_custom_call.1} parent=1 // pred_check
      _
    $region7: #{tpu_custom_call.1} parent=1 // pred_check_branch
      %19 = sbr.rel (0) target = $region9
    $region8: #{tpu_custom_call.1} parent=1 // pred_region
      %20 = dma.done [#allocation3], 128
    $region9: #{tpu_custom_call.1} parent=1 // pred_fallthru
      _
    %v21 = vld [vmem:[#allocation2] sm:$0xff]
    %22 = vrot.lane.b32.xlu0 %v21, 1
    %v23 = vpop.permute.xlu0 %22
    %24 = vst [vmem:[#allocation5] sm:$0xff] %v23
    // Predicated region
    $region10: #{tpu_custom_call.1} parent=1 // pred_check
      _
    $region11: #{tpu_custom_call.1} parent=1 // pred_check_branch
      %26 = sbr.rel (0) target = $region13
    $region12: #{tpu_custom_call.1} parent=1 // pred_region
      %s28 = ssub.s32 128, 128
      %29 = vsyncadd [#allocation4], %s28
      %s31 = sshll.u32 [#allocation5], 4
      %s32 = int_to_ptr.vmem [resolvable:$true] %s31
      %34 = dma.vmem_to_hbm [thread:$0]  %s32, 128, %s1, [#allocation4]
    $region13: #{tpu_custom_call.1} parent=1 // pred_fallthru
      _
    // Predicated region
    $region14: #{tpu_custom_call.1} parent=1 // pred_check
      _
    $region15: #{tpu_custom_call.1} parent=1 // pred_check_branch
      %36 = sbr.rel (0) target = $region17
    $region16: #{tpu_custom_call.1} parent=1 // pred_region
      %37 = dma.done [#allocation4], 128
    $region17: #{tpu_custom_call.1} parent=1 // pred_fallthru
      _
    %38 = vsyncpa [#allocation3], 1
    %39 = vsyncpa [#allocation4], 1

</llo_original>
